<compile_context>
chip_gen: v7x
topology: tpu7x:2x2x1
jax: 0.10.0
libtpu: 0.0.40
codegen_flags: <defaults>
</compile_context>

<pallas_src>
import jax
import jax.numpy as jnp
from jax.experimental import pallas as pl
from jax.experimental.pallas import tpu as pltpu


def _wide_linear_kernel(idx_ref, dense_ref, table_ref, w_ref, out_ref):
    # idx_ref   : (S, TB) int32 VMEM -- pre-offset sparse ids, batch on lanes
    # dense_ref : (D, TB) f32   VMEM -- dense values, batch on lanes
    # table_ref : (1, Vp) f32   VMEM -- lane-dense concatenated 1-dim embedding table
    # w_ref     : (D, 1)  f32   VMEM -- dense weight column
    # out_ref   : (1, TB) f32   VMEM -- output logits, batch on lanes
    n_sparse = idx_ref.shape[0]
    vp = table_ref.shape[1]
    tb = out_ref.shape[1]

    # ---- dense part on the VPU/XLU: (D, TB) * (D, 1) -> sublane reduce -> (1, TB)
    dense_logit = jnp.sum(dense_ref[...] * w_ref[...], axis=0, keepdims=True)

    # ---- sparse part, fully vectorized:
    # multi-hot counts[v, b] = #{f : ids[f, b] == v}, built with a broadcasted
    # iota-compare (VPU), then contracted with the lane-dense table on the MXU.
    ids = idx_ref[...]                                               # (S, TB) int32
    iota_v = jax.lax.broadcasted_iota(jnp.int32, (vp, tb), 0)        # vocab id per sublane
    counts = jnp.zeros((vp, tb), jnp.float32)
    for f in range(n_sparse):                                        # S is small & static
        counts = counts + (iota_v == ids[f:f + 1, :]).astype(jnp.float32)
    sparse_logit = jnp.dot(table_ref[...], counts,
                           preferred_element_type=jnp.float32)       # (1, TB)

    out_ref[...] = dense_logit + sparse_logit


def wide_linear(sparse_idx, dense_vals, emb_table, dense_w, *, tb=128):
    """Fused wide-linear logit: out[b, 0] = sum_f table[idx[b, f]] + dense[b] @ w."""
    B, S = sparse_idx.shape
    D = dense_vals.shape[1]
    V = emb_table.shape[0]

    bp = pl.cdiv(B, tb) * tb
    vp = pl.cdiv(V, 128) * 128

    # Lane-dense (transposed) layouts: batch on the lane axis everywhere.
    idx_t = jnp.transpose(sparse_idx.astype(jnp.int32))              # (S, B)
    dense_t = jnp.transpose(dense_vals.astype(jnp.float32))          # (D, B)
    if bp != B:
        idx_t = jnp.pad(idx_t, ((0, 0), (0, bp - B)))                # pad ids with 0 (valid)
        dense_t = jnp.pad(dense_t, ((0, 0), (0, bp - B)))

    table_row = jnp.pad(emb_table.astype(jnp.float32).reshape(1, V),
                        ((0, 0), (0, vp - V)))                       # (1, Vp), zero-padded
    w_col = dense_w.reshape(D, 1).astype(jnp.float32)                # (D, 1)

    grid_spec = pltpu.PrefetchScalarGridSpec(
        num_scalar_prefetch=0,
        grid=(bp // tb,),
        in_specs=[
            pl.BlockSpec((S, tb), lambda i: (0, i)),    # sparse ids, batch-tiled on lanes
            pl.BlockSpec((D, tb), lambda i: (0, i)),    # dense values, batch-tiled on lanes
            pl.BlockSpec((1, vp), lambda i: (0, 0)),    # embedding table, resident
            pl.BlockSpec((D, 1), lambda i: (0, 0)),     # dense weight, resident
        ],
        out_specs=pl.BlockSpec((1, tb), lambda i: (0, i)),
    )

    out = pl.pallas_call(
        _wide_linear_kernel,
        out_shape=jax.ShapeDtypeStruct((1, bp), jnp.float32),
        grid_spec=grid_spec,
        compiler_params=pltpu.CompilerParams(
            dimension_semantics=("parallel",)),
    )(idx_t, dense_t, table_row, w_col)

    return jnp.transpose(out)[:B]                                    # (B, 1)


if __name__ == "__main__":
    key = jax.random.PRNGKey(0)
    k_emb, k_w, k_idx, k_dense = jax.random.split(key, 4)

    # Synthetic feature config (mirrors SparseFeat / DenseFeat setup).
    B = 512
    vocab_sizes = [5, 7, 4]      # 3 sparse features, linear embedding dim = 1
    dense_dims = [2, 3]          # 2 dense features -> D_dense = 5
    init_std = 0.0001

    S = len(vocab_sizes)
    V_total = sum(vocab_sizes)
    D_dense = sum(dense_dims)

    # Deterministic parameter init (nn.init.normal_, mean=0, std=init_std).
    emb_table = (init_std * jax.random.normal(k_emb, (V_total, 1))).astype(jnp.float32)
    dense_w = (init_std * jax.random.normal(k_w, (D_dense, 1))).astype(jnp.float32)

    # Build X exactly like the PyTorch module input: sparse id columns (as floats)
    # followed by dense value columns.
    raw_idx = jnp.stack(
        [jax.random.randint(jax.random.fold_in(k_idx, i), (B,), 0, v)
         for i, v in enumerate(vocab_sizes)], axis=1)                 # (B, S)
    dense_part = jax.random.normal(k_dense, (B, D_dense), jnp.float32)
    X = jnp.concatenate([raw_idx.astype(jnp.float32), dense_part], axis=1)

    # Glue: slice X per feature_index and offset sparse ids into the concatenated table.
    offs, acc = [], 0
    for v in vocab_sizes:
        offs.append(acc)
        acc += v
    offsets = jnp.array(offs, jnp.int32)                              # (S,)
    sparse_idx = X[:, :S].astype(jnp.int32) + offsets[None, :]        # (B, S)
    dense_vals = X[:, S:]                                             # (B, D)

    out = wide_linear(sparse_idx, dense_vals, emb_table, dense_w, tb=128)
    out = jax.block_until_ready(out)

    # Pure-JAX reference (matches the PyTorch forward).
    ref = emb_table[sparse_idx, 0].sum(axis=1, keepdims=True) + dense_vals @ dense_w
    assert out.shape == (B, 1)
    assert jnp.allclose(out, ref, atol=1e-5, rtol=1e-5)

    print("KERNEL_OK")
</pallas_src>

<mosaic_0001>
module attributes {stable_mosaic.version = 11 : i64} {
  func.func @_wide_linear_kernel(%arg0: i32, %arg1: memref<3x128xi32, #tpu.memory_space<vmem>>, %arg2: memref<5x128xf32, #tpu.memory_space<vmem>>, %arg3: memref<1x128xf32, #tpu.memory_space<vmem>>, %arg4: memref<5x1xf32, #tpu.memory_space<vmem>>, %arg5: memref<1x128xf32, #tpu.memory_space<vmem>>) attributes {dimension_semantics = [#tpu.dimension_semantics<parallel>], iteration_bounds = array<i64: 4>, scalar_prefetch = 0 : i64, scratch_operands = 0 : i64, tpu.core_type = #tpu.core_type<tc>, window_params = [{transform_indices = @transform_0, window_bounds = array<i64: 3, 128>}, {transform_indices = @transform_1, window_bounds = array<i64: 5, 128>}, {pipeline_mode = #tpu.pipeline_mode<synchronous>, transform_indices = @transform_2, window_bounds = array<i64: 1, 128>}, {pipeline_mode = #tpu.pipeline_mode<synchronous>, transform_indices = @transform_3, window_bounds = array<i64: 5, 1>}, {transform_indices = @transform_4, window_bounds = array<i64: 1, 128>}]} {
    %c0 = arith.constant 0 : index
    %c0_0 = arith.constant 0 : index
    %0 = vector.load %arg2[%c0, %c0_0] : memref<5x128xf32, #tpu.memory_space<vmem>>, vector<5x128xf32>
    %c0_1 = arith.constant 0 : index
    %c0_2 = arith.constant 0 : index
    %1 = vector.load %arg4[%c0_1, %c0_2] : memref<5x1xf32, #tpu.memory_space<vmem>>, vector<5x1xf32>
    %2 = vector.broadcast %1 : vector<5x1xf32> to vector<5x128xf32>
    %3 = arith.mulf %0, %2 : vector<5x128xf32>
    %cst = arith.constant dense<0.000000e+00> : vector<128xf32>
    %4 = vector.multi_reduction <add>, %3, %cst [0] : vector<5x128xf32> to vector<128xf32>
    %5 = vector.shape_cast %4 : vector<128xf32> to vector<1x128xf32>
    %c0_3 = arith.constant 0 : index
    %c0_4 = arith.constant 0 : index
    %6 = vector.load %arg1[%c0_3, %c0_4] : memref<3x128xi32, #tpu.memory_space<vmem>>, vector<3x128xi32>
    %7 = tpu.iota {dimensions = array<i32: 0>} : vector<128x128xi32>
    %cst_5 = arith.constant 0.000000e+00 : f32
    %8 = vector.broadcast %cst_5 : f32 to vector<128x128xf32>
    %9 = vector.extract_strided_slice %6 {offsets = [0, 0], sizes = [1, 128], strides = [1, 1]} : vector<3x128xi32> to vector<1x128xi32>
    %10 = vector.broadcast %9 : vector<1x128xi32> to vector<128x128xi32>
    %11 = arith.cmpi eq, %7, %10 : vector<128x128xi32>
    %12 = arith.extui %11 : vector<128x128xi1> to vector<128x128xi32>
    %13 = arith.sitofp %12 : vector<128x128xi32> to vector<128x128xf32>
    %14 = arith.addf %8, %13 : vector<128x128xf32>
    %15 = vector.extract_strided_slice %6 {offsets = [1, 0], sizes = [1, 128], strides = [1, 1]} : vector<3x128xi32> to vector<1x128xi32>
    %16 = vector.broadcast %15 : vector<1x128xi32> to vector<128x128xi32>
    %17 = arith.cmpi eq, %7, %16 : vector<128x128xi32>
    %18 = arith.extui %17 : vector<128x128xi1> to vector<128x128xi32>
    %19 = arith.sitofp %18 : vector<128x128xi32> to vector<128x128xf32>
    %20 = arith.addf %14, %19 : vector<128x128xf32>
    %21 = vector.extract_strided_slice %6 {offsets = [2, 0], sizes = [1, 128], strides = [1, 1]} : vector<3x128xi32> to vector<1x128xi32>
    %22 = vector.broadcast %21 : vector<1x128xi32> to vector<128x128xi32>
    %23 = arith.cmpi eq, %7, %22 : vector<128x128xi32>
    %24 = arith.extui %23 : vector<128x128xi1> to vector<128x128xi32>
    %25 = arith.sitofp %24 : vector<128x128xi32> to vector<128x128xf32>
    %26 = arith.addf %20, %25 : vector<128x128xf32>
    %c0_6 = arith.constant 0 : index
    %c0_7 = arith.constant 0 : index
    %27 = vector.load %arg3[%c0_6, %c0_7] : memref<1x128xf32, #tpu.memory_space<vmem>>, vector<1x128xf32>
    %cst_8 = arith.constant dense<0.000000e+00> : vector<1x128xf32>
    %28 = tpu.matmul %27, %26, %cst_8 {dimension_numbers = #tpu.dot_dimension_numbers<[1], [0], [0], [1], [0, 0, 1, 1], [], []>} : vector<1x128xf32>, vector<128x128xf32>, vector<1x128xf32> -> vector<1x128xf32>
    %29 = arith.addf %5, %28 : vector<1x128xf32>
    %c0_9 = arith.constant 0 : index
    %c0_10 = arith.constant 0 : index
    %30 = vector.load %arg5[%c0_9, %c0_10] : memref<1x128xf32, #tpu.memory_space<vmem>>, vector<1x128xf32>
    tpu.vector_store %arg5[%c0_9, %c0_10], %29 {strides = array<i32>} : memref<1x128xf32, #tpu.memory_space<vmem>>, vector<1x128xf32>,
    return
  }
  func.func @transform_0(%arg0: i32) -> (i32, i32) {
    %c0_i32 = arith.constant 0 : i32
    %c0_i32_0 = arith.constant 0 : i32
    return %c0_i32, %arg0 : i32, i32
  }
  func.func @transform_1(%arg0: i32) -> (i32, i32) {
    %c0_i32 = arith.constant 0 : i32
    %c0_i32_0 = arith.constant 0 : i32
    return %c0_i32, %arg0 : i32, i32
  }
  func.func @transform_2(%arg0: i32) -> (i32, i32) {
    %c0_i32 = arith.constant 0 : i32
    %c0_i32_0 = arith.constant 0 : i32
    %c0_i32_1 = arith.constant 0 : i32
    return %c0_i32, %c0_i32_0 : i32, i32
  }
  func.func @transform_3(%arg0: i32) -> (i32, i32) {
    %c0_i32 = arith.constant 0 : i32
    %c0_i32_0 = arith.constant 0 : i32
    %c0_i32_1 = arith.constant 0 : i32
    return %c0_i32, %c0_i32_0 : i32, i32
  }
  func.func @transform_4(%arg0: i32) -> (i32, i32) {
    %c0_i32 = arith.constant 0 : i32
    %c0_i32_0 = arith.constant 0 : i32
    return %c0_i32, %arg0 : i32, i32
  }
}

</mosaic_0001>

<llo_original>
// kernel: tpu_custom_call.1
$region0: #{tpu_custom_call.1}
  #allocation0 [shape = 'u32[]', space=smem, size = 0x4, offset = 0x4, fixed_abs, tag = 'smem constant byte address 0x4 - core index']
  #allocation1 [shape = 'u32[144,128]{1,0:T(1,128)}', space=vmem, size = 0x12000, scoped, tag = 'internal scratch']
  %s0 = inlined_call_operand.hbm [shape: s32[3,512], index: 0, kind: input, shape index: {}]
  %s1 = inlined_call_operand.hbm [shape: f32[5,512], index: 1, kind: input, shape index: {}]
  %s2 = inlined_call_operand.vmem [shape: f32[1,128], index: 2, kind: input, shape index: {}]
  %s3 = inlined_call_operand.vmem [shape: f32[5,1], index: 3, kind: input, shape index: {}]
  %s4 = inlined_call_operand.hbm [shape: f32[1,512], index: 4, kind: output, shape index: {}]
  %s5 = sld [smem:[#allocation0]]
  $region57: #{tpu_custom_call.1} parent=0
    _
  %s7 = ssub.s32 1, %s5
  %s8 = scalar_select 0, %s7, %s5
  $region1: #{tpu_custom_call.1} parent=0
    #allocation2 [shape = 'u8[4096]{0}', space=vmem, size = 0x1000, scoped, tag = 'input window, operand 0']
    #allocation3 [shape = 's32[2]{0}', space=sflag, size = 0x8, scoped, tag = 'scoped memory for tpu_custom_call.1']
    #allocation4 [shape = 's32[2]{0}', space=sflag, size = 0x8, scoped, tag = 'scoped memory for tpu_custom_call.1']
    #allocation5 [shape = 'u8[8192]{0}', space=vmem, size = 0x2000, scoped, tag = 'input window, operand 1']
    #allocation6 [shape = 's32[2]{0}', space=sflag, size = 0x8, scoped, tag = 'scoped memory for tpu_custom_call.1']
    #allocation7 [shape = 'u8[1024]{0}', space=vmem, size = 0x400, scoped, tag = 'output window, operand 0']
    %9 = vsyncpa [#allocation3], 0
    %s10 = scalar_lea.sflag [#allocation3], 1
    %11 = vsyncpa %s10, 0
    %12 = vsyncpa [#allocation6], 0
    %s13 = scalar_lea.sflag [#allocation6], 1
    %14 = vsyncpa %s13, 0
    %15 = vsyncpa [#allocation4], 0
    %s16 = scalar_lea.sflag [#allocation4], 1
    %17 = vsyncpa %s16, 0
    loop: start=0, step=1, limit=6
    $region2: #{tpu_custom_call.1} parent=1 // loop_pre_header
      _
    $region3: #{tpu_custom_call.1} parent=1 // loop_header
      %s19 = sphi 0, %s23
      %p20 = scmp.ge.s32.totalorder %s19, 6
      %s29 = sphi 0, %s31
      %s32 = sphi 0, %s29
      %s33 = sphi 0, %s32
      %s49 = sphi 0, %s33
      %s55 = sphi 0, %s57
      %s58 = sphi 0, %s55
      %s59 = sphi 0, %s58
      %s75 = sphi 0, %s59
      %s79 = sphi 0, %s79
      %s81 = sphi 0, %s79
      %s82 = sphi 0, %s81
      %s96 = sphi 0, %s82
      %s100 = sphi 0, %s100
      %s102 = sphi 0, %s100
      %s103 = sphi 0, %s102
      %s117 = sphi 0, %s103
      %s123 = sphi 0, %s125
      %s126 = sphi 0, %s123
      %s127 = sphi 0, %s126
      %s143 = sphi 0, %s127
    $region4: #{tpu_custom_call.1} parent=1 // loop_header_branch
      %22 = sbr.rel (%p20) target = $region8
    $region5: #{tpu_custom_call.1} parent=1 // loop_body
      %s24 = ssub.s32 %s19, 1
      %s25 = ssub.s32 %s19, 2
      %s26 = sadd.s32 %s19, 1
      %s27 = ssub.s32 %s19, %s26
      %p28 = scmp.eq.s32.totalorder %s27, 0
      %s30 = sadd.s32 %s29, 1
      %s31 = scalar_select %p28, %s29, %s30
      %p34 = pneg %p28
      %p35 = scmp.eq.s32.totalorder %s19, 3
      %p36 = por %p34, %p35
      %p37 = scmp.ne.s32.totalorder %s29, %s32
      %p38 = scmp.eq.s32.totalorder %s19, 0
      %p39 = por %p37, %p38
      %p40 = scmp.ne.s32.totalorder %s29, %s32
      %p41 = scmp.eq.s32.totalorder %s24, 3
      %p42 = por %p40, %p41
      %p43 = scmp.ne.s32.totalorder %s32, %s33
      %p44 = scmp.eq.s32.totalorder %s24, 0
      %p45 = por %p43, %p44
      %p46 = scmp.ne.s32.totalorder %s32, %s33
      %p47 = scmp.eq.s32.totalorder %s25, 3
      %p48 = por %p46, %p47
      %p50 = scmp.ne.s32.totalorder %s33, %s49
      %p51 = scmp.eq.s32.totalorder %s25, 0
      %p52 = por %p50, %p51
      %s53 = ssub.s32 %s19, %s26
      %p54 = scmp.eq.s32.totalorder %s53, 0
      %s56 = sadd.s32 %s55, 1
      %s57 = scalar_select %p54, %s55, %s56
      %p60 = pneg %p54
      %p61 = scmp.eq.s32.totalorder %s19, 3
      %p62 = por %p60, %p61
      %p63 = scmp.ne.s32.totalorder %s55, %s58
      %p64 = scmp.eq.s32.totalorder %s19, 0
      %p65 = por %p63, %p64
      %p66 = scmp.ne.s32.totalorder %s55, %s58
      %p67 = scmp.eq.s32.totalorder %s24, 3
      %p68 = por %p66, %p67
      %p69 = scmp.ne.s32.totalorder %s58, %s59
      %p70 = scmp.eq.s32.totalorder %s24, 0
      %p71 = por %p69, %p70
      %p72 = scmp.ne.s32.totalorder %s58, %s59
      %p73 = scmp.eq.s32.totalorder %s25, 3
      %p74 = por %p72, %p73
      %p76 = scmp.ne.s32.totalorder %s59, %s75
      %p77 = scmp.eq.s32.totalorder %s25, 0
      %p78 = por %p76, %p77
      %s80 = sadd.s32 %s79, 1
      %p83 = scmp.eq.s32.totalorder %s19, 3
      %p84 = scmp.ne.s32.totalorder %s79, %s81
      %p85 = scmp.eq.s32.totalorder %s19, 0
      %p86 = por %p84, %p85
      %p87 = scmp.ne.s32.totalorder %s79, %s81
      %p88 = scmp.eq.s32.totalorder %s24, 3
      %p89 = por %p87, %p88
      %p90 = scmp.ne.s32.totalorder %s81, %s82
      %p91 = scmp.eq.s32.totalorder %s24, 0
      %p92 = por %p90, %p91
      %p93 = scmp.ne.s32.totalorder %s81, %s82
      %p94 = scmp.eq.s32.totalorder %s25, 3
      %p95 = por %p93, %p94
      %p97 = scmp.ne.s32.totalorder %s82, %s96
      %p98 = scmp.eq.s32.totalorder %s25, 0
      %p99 = por %p97, %p98
      %s101 = sadd.s32 %s100, 1
      %p104 = scmp.eq.s32.totalorder %s19, 3
      %p105 = scmp.ne.s32.totalorder %s100, %s102
      %p106 = scmp.eq.s32.totalorder %s19, 0
      %p107 = por %p105, %p106
      %p108 = scmp.ne.s32.totalorder %s100, %s102
      %p109 = scmp.eq.s32.totalorder %s24, 3
      %p110 = por %p108, %p109
      %p111 = scmp.ne.s32.totalorder %s102, %s103
      %p112 = scmp.eq.s32.totalorder %s24, 0
      %p113 = por %p111, %p112
      %p114 = scmp.ne.s32.totalorder %s102, %s103
      %p115 = scmp.eq.s32.totalorder %s25, 3
      %p116 = por %p114, %p115
      %p118 = scmp.ne.s32.totalorder %s103, %s117
      %p119 = scmp.eq.s32.totalorder %s25, 0
      %p120 = por %p118, %p119
      %s121 = ssub.s32 %s19, %s26
      %p122 = scmp.eq.s32.totalorder %s121, 0
      %s124 = sadd.s32 %s123, 1
      %s125 = scalar_select %p122, %s123, %s124
      %p128 = pneg %p122
      %p129 = scmp.eq.s32.totalorder %s19, 3
      %p130 = por %p128, %p129
      %p131 = scmp.ne.s32.totalorder %s123, %s126
      %p132 = scmp.eq.s32.totalorder %s19, 0
      %p133 = por %p131, %p132
      %p134 = scmp.ne.s32.totalorder %s123, %s126
      %p135 = scmp.eq.s32.totalorder %s24, 3
      %p136 = por %p134, %p135
      %p137 = scmp.ne.s32.totalorder %s126, %s127
      %p138 = scmp.eq.s32.totalorder %s24, 0
      %p139 = por %p137, %p138
      %p140 = scmp.ne.s32.totalorder %s126, %s127
      %p141 = scmp.eq.s32.totalorder %s25, 3
      %p142 = por %p140, %p141
      %p144 = scmp.ne.s32.totalorder %s127, %s143
      %p145 = scmp.eq.s32.totalorder %s25, 0
      %p146 = por %p144, %p145
      %p147 = scmp.le.s32.totalorder 1, %s19
      %p148 = scmp.lt.s32.totalorder %s19, 5
      %p149 = pnand %p147, %p148
      %p150 = pneg %p149
      // Predicated region
      $region9: #{tpu_custom_call.1} parent=5 // pred_check
        _
      $region10: #{tpu_custom_call.1} parent=5 // pred_check_branch
        %152 = sbr.rel (%p149) target = $region12
      $region11: #{tpu_custom_call.1} parent=5 // pred_region
        %s153 = ssub.s32 %s19, 1
        // Predicated region
        $region13: #{tpu_custom_call.1} parent=11 // pred_check
          %p154 = pneg %p92
        $region14: #{tpu_custom_call.1} parent=11 // pred_check_branch
          %156 = sbr.rel (%p154) target = $region16
        $region15: #{tpu_custom_call.1} parent=11 // pred_region
          _
        $region16: #{tpu_custom_call.1} parent=11 // pred_fallthru
          _
        // Predicated region
        $region17: #{tpu_custom_call.1} parent=11 // pred_check
          %p157 = pneg %p113
        $region18: #{tpu_custom_call.1} parent=11 // pred_check_branch
          %159 = sbr.rel (%p157) target = $region20
        $region19: #{tpu_custom_call.1} parent=11 // pred_region
          _
        $region20: #{tpu_custom_call.1} parent=11 // pred_fallthru
          _
      $region12: #{tpu_custom_call.1} parent=5 // pred_fallthru
        _
      %p160 = scmp.lt.s32.totalorder %s19, 4
      // Predicated region
      $region21: #{tpu_custom_call.1} parent=5 // pred_check
        %p161 = pneg %p160
      $region22: #{tpu_custom_call.1} parent=5 // pred_check_branch
        %163 = sbr.rel (%p161) target = $region24
      $region23: #{tpu_custom_call.1} parent=5 // pred_region
        // Predicated region
        $region25: #{tpu_custom_call.1} parent=23 // pred_check
          %p164 = pneg %p39
        $region26: #{tpu_custom_call.1} parent=23 // pred_check_branch
          %166 = sbr.rel (%p164) target = $region28
        $region27: #{tpu_custom_call.1} parent=23 // pred_region
          %s167 = sand.u32 %s29, 1
          %s168 = scalar_lea.sflag [#allocation3], %s167
          %s169 = sand.u32 %s29, 1
          %s170 = smul.addr %s169, 4
          %s171 = scalar_lea.vmem [#allocation2], %s170
          %s173 = ssub.s32 64, 64
          %174 = vsyncadd %s168, %s173
          %s175 = smul.addr %s19, 64
          %s176 = scalar_lea.hbm %s0, %s175
          %s178 = sshll.u32 %s171, 4
          %s179 = int_to_ptr.vmem [resolvable:$true] %s178
          %181 = dma.hbm_to_vmem [thread:$0]  %s176, 64, %s179, %s168
        $region28: #{tpu_custom_call.1} parent=23 // pred_fallthru
          _
        // Predicated region
        $region29: #{tpu_custom_call.1} parent=23 // pred_check
          %p182 = pneg %p65
        $region30: #{tpu_custom_call.1} parent=23 // pred_check_branch
          %184 = sbr.rel (%p182) target = $region32
        $region31: #{tpu_custom_call.1} parent=23 // pred_region
          %s185 = sand.u32 %s55, 1
          %s186 = scalar_lea.sflag [#allocation6], %s185
          %s187 = sand.u32 %s55, 1
          %s188 = smul.addr %s187, 8
          %s189 = scalar_lea.vmem [#allocation5], %s188
          %s191 = ssub.s32 128, 128
          %192 = vsyncadd %s186, %s191
          %s193 = smul.addr %s19, 128
          %s194 = scalar_lea.hbm %s1, %s193
          %s196 = sshll.u32 %s189, 4
          %s197 = int_to_ptr.vmem [resolvable:$true] %s196
          %199 = dma.hbm_to_vmem [thread:$0]  %s194, 128, %s197, %s186
        $region32: #{tpu_custom_call.1} parent=23 // pred_fallthru
          _
      $region24: #{tpu_custom_call.1} parent=5 // pred_fallthru
        _
      %p200 = scmp.le.s32.totalorder 1, %s19
      %p201 = scmp.lt.s32.totalorder %s19, 5
      %p202 = pnand %p200, %p201
      %p203 = pneg %p202
      // Predicated region
      $region33: #{tpu_custom_call.1} parent=5 // pred_check
        _
      $region34: #{tpu_custom_call.1} parent=5 // pred_check_branch
        %205 = sbr.rel (%p202) target = $region36
      $region35: #{tpu_custom_call.1} parent=5 // pred_region
        %s206 = ssub.s32 %s19, 1
        %s207 = sand.u32 %s32, 1
        %s208 = scalar_lea.sflag [#allocation3], %s207
        %s209 = sand.u32 %s32, 1
        %s210 = smul.addr %s209, 4
        %s211 = scalar_lea.vmem [#allocation2], %s210
        // Predicated region
        $region37: #{tpu_custom_call.1} parent=35 // pred_check
          %p212 = pneg %p45
        $region38: #{tpu_custom_call.1} parent=35 // pred_check_branch
          %214 = sbr.rel (%p212) target = $region40
        $region39: #{tpu_custom_call.1} parent=35 // pred_region
          %215 = dma.done %s208, 64
        $region40: #{tpu_custom_call.1} parent=35 // pred_fallthru
          _
        %s216 = sand.u32 %s58, 1
        %s217 = scalar_lea.sflag [#allocation6], %s216
        %s218 = sand.u32 %s58, 1
        %s219 = smul.addr %s218, 8
        %s220 = scalar_lea.vmem [#allocation5], %s219
        // Predicated region
        $region41: #{tpu_custom_call.1} parent=35 // pred_check
          %p221 = pneg %p71
        $region42: #{tpu_custom_call.1} parent=35 // pred_check_branch
          %223 = sbr.rel (%p221) target = $region44
        $region43: #{tpu_custom_call.1} parent=35 // pred_region
          %224 = dma.done %s217, 128
        $region44: #{tpu_custom_call.1} parent=35 // pred_fallthru
          _
        %s225 = sand.u32 %s32, 1
        %s226 = scalar_lea.sflag [#allocation3], %s225
        %s227 = sand.u32 %s32, 1
        %s228 = smul.addr %s227, 4
        %s229 = scalar_lea.vmem [#allocation2], %s228
        %p230 = pneg %p45
        %p231 = pneg %p42
        %s232 = sand.u32 %s58, 1
        %s233 = scalar_lea.sflag [#allocation6], %s232
        %s234 = sand.u32 %s58, 1
        %s235 = smul.addr %s234, 8
        %s236 = scalar_lea.vmem [#allocation5], %s235
        %p237 = pneg %p71
        %p238 = pneg %p68
        %p239 = pneg %p92
        %p240 = pneg %p89
        %p241 = pneg %p113
        %p242 = pneg %p110
        %p243 = pneg %p139
        %p244 = pneg %p136
        %s245 = sand.u32 %s126, 1
        %s246 = scalar_lea.sflag [#allocation4], %s245
        %s247 = sand.u32 %s126, 1
        %s248 = scalar_lea.vmem [#allocation7], %s247
        %v249 = vld [vmem:[%s220] sm:$0x1f]
        %v250 = vld [vmem:[%s3] sm:$0x1f]
        %252 = vset.pattern.permute.xlu0 0
        %253 = vperm.xlu0 %252, %v250
        %v254 = vpop.permute.xlu0 %253
        %v256 = vmul.f32 %v249, %v254
        %vm257 = vcmask 1044480
        %v258 = vsel %vm257, %v256, 0.0
        %v259 = vrot.slane %v258, 4
        %v260 = vadd.f32 %v258, %v259
        %v261 = vrot.slane %v260, 2
        %v262 = vadd.f32 %v260, %v261
        %v263 = vrot.slane %v262, 1
        %v264 = vadd.f32 %v262, %v263
        %v265 = vld [vmem:[%s211] sm:$0x7]
        %v266 = vlaneseq
        %v267 = vshrl.u32 %v266, 7
        %v268 = vadd.s32 %v267, 8
        %v269 = vadd.s32 %v267, 16
        %v270 = vadd.s32 %v267, 24
        %v271 = vadd.s32 %v267, 32
        %v272 = vadd.s32 %v267, 40
        %v273 = vadd.s32 %v267, 48
        %v274 = vadd.s32 %v267, 56
        %v275 = vadd.s32 %v267, 64
        %v276 = vadd.s32 %v267, 72
        %v277 = vadd.s32 %v267, 80
        %v278 = vadd.s32 %v267, 88
        %v279 = vadd.s32 %v267, 96
        %v280 = vadd.s32 %v267, 104
        %v281 = vadd.s32 %v267, 112
        %v282 = vadd.s32 %v267, 120
        %v283 = vlaneseq
        %v284 = vshrl.u32 %v283, 7
        %v285 = vsub.s32 0, %v284
        %v286 = vrot.slane %v265, %v285
        %vm287 = vcmp.eq.s32.totalorder %v267, %v286
        %vm288 = vcmp.eq.s32.totalorder %v268, %v286
        %vm289 = vcmp.eq.s32.totalorder %v269, %v286
        %vm290 = vcmp.eq.s32.totalorder %v270, %v286
        %vm291 = vcmp.eq.s32.totalorder %v271, %v286
        %vm292 = vcmp.eq.s32.totalorder %v272, %v286
        %vm293 = vcmp.eq.s32.totalorder %v273, %v286
        %vm294 = vcmp.eq.s32.totalorder %v274, %v286
        %vm295 = vcmp.eq.s32.totalorder %v275, %v286
        %vm296 = vcmp.eq.s32.totalorder %v276, %v286
        %vm297 = vcmp.eq.s32.totalorder %v277, %v286
        %vm298 = vcmp.eq.s32.totalorder %v278, %v286
        %vm299 = vcmp.eq.s32.totalorder %v279, %v286
        %vm300 = vcmp.eq.s32.totalorder %v280, %v286
        %vm301 = vcmp.eq.s32.totalorder %v281, %v286
        %vm302 = vcmp.eq.s32.totalorder %v282, %v286
        %v303 = vsel %vm287, 1, 0
        %v304 = vsel %vm288, 1, 0
        %v305 = vsel %vm289, 1, 0
        %v306 = vsel %vm290, 1, 0
        %v307 = vsel %vm291, 1, 0
        %v308 = vsel %vm292, 1, 0
        %v309 = vsel %vm293, 1, 0
        %v310 = vsel %vm294, 1, 0
        %v311 = vsel %vm295, 1, 0
        %v312 = vsel %vm296, 1, 0
        %v313 = vsel %vm297, 1, 0
        %v314 = vsel %vm298, 1, 0
        %v315 = vsel %vm299, 1, 0
        %v316 = vsel %vm300, 1, 0
        %v317 = vsel %vm301, 1, 0
        %v318 = vsel %vm302, 1, 0
        %v319 = vcvt.s32.f32 %v303
        %v320 = vcvt.s32.f32 %v304
        %v321 = vcvt.s32.f32 %v305
        %v322 = vcvt.s32.f32 %v306
        %v323 = vcvt.s32.f32 %v307
        %v324 = vcvt.s32.f32 %v308
        %v325 = vcvt.s32.f32 %v309
        %v326 = vcvt.s32.f32 %v310
        %v327 = vcvt.s32.f32 %v311
        %v328 = vcvt.s32.f32 %v312
        %v329 = vcvt.s32.f32 %v313
        %v330 = vcvt.s32.f32 %v314
        %v331 = vcvt.s32.f32 %v315
        %v332 = vcvt.s32.f32 %v316
        %v333 = vcvt.s32.f32 %v317
        %v334 = vcvt.s32.f32 %v318
        %v335 = vadd.f32 %v319, 0.0
        %v336 = vadd.f32 %v320, 0.0
        %v337 = vadd.f32 %v321, 0.0
        %v338 = vadd.f32 %v322, 0.0
        %v339 = vadd.f32 %v323, 0.0
        %v340 = vadd.f32 %v324, 0.0
        %v341 = vadd.f32 %v325, 0.0
        %v342 = vadd.f32 %v326, 0.0
        %v343 = vadd.f32 %v327, 0.0
        %v344 = vadd.f32 %v328, 0.0
        %v345 = vadd.f32 %v329, 0.0
        %v346 = vadd.f32 %v330, 0.0
        %v347 = vadd.f32 %v331, 0.0
        %v348 = vadd.f32 %v332, 0.0
        %v349 = vadd.f32 %v333, 0.0
        %v350 = vadd.f32 %v334, 0.0
        %v351 = vlaneseq
        %v352 = vshrl.u32 %v351, 7
        %v353 = vsub.s32 1, %v352
        %v354 = vrot.slane %v265, %v353
        %vm355 = vcmp.eq.s32.totalorder %v267, %v354
        %vm356 = vcmp.eq.s32.totalorder %v268, %v354
        %vm357 = vcmp.eq.s32.totalorder %v269, %v354
        %vm358 = vcmp.eq.s32.totalorder %v270, %v354
        %vm359 = vcmp.eq.s32.totalorder %v271, %v354
        %vm360 = vcmp.eq.s32.totalorder %v272, %v354
        %vm361 = vcmp.eq.s32.totalorder %v273, %v354
        %vm362 = vcmp.eq.s32.totalorder %v274, %v354
        %vm363 = vcmp.eq.s32.totalorder %v275, %v354
        %vm364 = vcmp.eq.s32.totalorder %v276, %v354
        %vm365 = vcmp.eq.s32.totalorder %v277, %v354
        %vm366 = vcmp.eq.s32.totalorder %v278, %v354
        %vm367 = vcmp.eq.s32.totalorder %v279, %v354
        %vm368 = vcmp.eq.s32.totalorder %v280, %v354
        %vm369 = vcmp.eq.s32.totalorder %v281, %v354
        %vm370 = vcmp.eq.s32.totalorder %v282, %v354
        %v371 = vsel %vm355, 1, 0
        %v372 = vsel %vm356, 1, 0
        %v373 = vsel %vm357, 1, 0
        %v374 = vsel %vm358, 1, 0
        %v375 = vsel %vm359, 1, 0
        %v376 = vsel %vm360, 1, 0
        %v377 = vsel %vm361, 1, 0
        %v378 = vsel %vm362, 1, 0
        %v379 = vsel %vm363, 1, 0
        %v380 = vsel %vm364, 1, 0
        %v381 = vsel %vm365, 1, 0
        %v382 = vsel %vm366, 1, 0
        %v383 = vsel %vm367, 1, 0
        %v384 = vsel %vm368, 1, 0
        %v385 = vsel %vm369, 1, 0
        %v386 = vsel %vm370, 1, 0
        %v387 = vcvt.s32.f32 %v371
        %v388 = vcvt.s32.f32 %v372
        %v389 = vcvt.s32.f32 %v373
        %v390 = vcvt.s32.f32 %v374
        %v391 = vcvt.s32.f32 %v375
        %v392 = vcvt.s32.f32 %v376
        %v393 = vcvt.s32.f32 %v377
        %v394 = vcvt.s32.f32 %v378
        %v395 = vcvt.s32.f32 %v379
        %v396 = vcvt.s32.f32 %v380
        %v397 = vcvt.s32.f32 %v381
        %v398 = vcvt.s32.f32 %v382
        %v399 = vcvt.s32.f32 %v383
        %v400 = vcvt.s32.f32 %v384
        %v401 = vcvt.s32.f32 %v385
        %v402 = vcvt.s32.f32 %v386
        %v403 = vadd.f32 %v335, %v387
        %v404 = vadd.f32 %v336, %v388
        %v405 = vadd.f32 %v337, %v389
        %v406 = vadd.f32 %v338, %v390
        %v407 = vadd.f32 %v339, %v391
        %v408 = vadd.f32 %v340, %v392
        %v409 = vadd.f32 %v341, %v393
        %v410 = vadd.f32 %v342, %v394
        %v411 = vadd.f32 %v343, %v395
        %v412 = vadd.f32 %v344, %v396
        %v413 = vadd.f32 %v345, %v397
        %v414 = vadd.f32 %v346, %v398
        %v415 = vadd.f32 %v347, %v399
        %v416 = vadd.f32 %v348, %v400
        %v417 = vadd.f32 %v349, %v401
        %v418 = vadd.f32 %v350, %v402
        %v419 = vlaneseq
        %v420 = vshrl.u32 %v419, 7
        %v421 = vsub.s32 2, %v420
        %v422 = vrot.slane %v265, %v421
        %vm423 = vcmp.eq.s32.totalorder %v267, %v422
        %vm424 = vcmp.eq.s32.totalorder %v268, %v422
        %vm425 = vcmp.eq.s32.totalorder %v269, %v422
        %vm426 = vcmp.eq.s32.totalorder %v270, %v422
        %vm427 = vcmp.eq.s32.totalorder %v271, %v422
        %vm428 = vcmp.eq.s32.totalorder %v272, %v422
        %vm429 = vcmp.eq.s32.totalorder %v273, %v422
        %vm430 = vcmp.eq.s32.totalorder %v274, %v422
        %vm431 = vcmp.eq.s32.totalorder %v275, %v422
        %vm432 = vcmp.eq.s32.totalorder %v276, %v422
        %vm433 = vcmp.eq.s32.totalorder %v277, %v422
        %vm434 = vcmp.eq.s32.totalorder %v278, %v422
        %vm435 = vcmp.eq.s32.totalorder %v279, %v422
        %vm436 = vcmp.eq.s32.totalorder %v280, %v422
        %vm437 = vcmp.eq.s32.totalorder %v281, %v422
        %vm438 = vcmp.eq.s32.totalorder %v282, %v422
        %v439 = vsel %vm423, 1, 0
        %v440 = vsel %vm424, 1, 0
        %v441 = vsel %vm425, 1, 0
        %v442 = vsel %vm426, 1, 0
        %v443 = vsel %vm427, 1, 0
        %v444 = vsel %vm428, 1, 0
        %v445 = vsel %vm429, 1, 0
        %v446 = vsel %vm430, 1, 0
        %v447 = vsel %vm431, 1, 0
        %v448 = vsel %vm432, 1, 0
        %v449 = vsel %vm433, 1, 0
        %v450 = vsel %vm434, 1, 0
        %v451 = vsel %vm435, 1, 0
        %v452 = vsel %vm436, 1, 0
        %v453 = vsel %vm437, 1, 0
        %v454 = vsel %vm438, 1, 0
        %v455 = vcvt.s32.f32 %v439
        %v456 = vcvt.s32.f32 %v440
        %v457 = vcvt.s32.f32 %v441
        %v458 = vcvt.s32.f32 %v442
        %v459 = vcvt.s32.f32 %v443
        %v460 = vcvt.s32.f32 %v444
        %v461 = vcvt.s32.f32 %v445
        %v462 = vcvt.s32.f32 %v446
        %v463 = vcvt.s32.f32 %v447
        %v464 = vcvt.s32.f32 %v448
        %v465 = vcvt.s32.f32 %v449
        %v466 = vcvt.s32.f32 %v450
        %v467 = vcvt.s32.f32 %v451
        %v468 = vcvt.s32.f32 %v452
        %v469 = vcvt.s32.f32 %v453
        %v470 = vcvt.s32.f32 %v454
        %v471 = vadd.f32 %v403, %v455
        %v472 = vadd.f32 %v404, %v456
        %v473 = vadd.f32 %v405, %v457
        %v474 = vadd.f32 %v406, %v458
        %v475 = vadd.f32 %v407, %v459
        %v476 = vadd.f32 %v408, %v460
        %v477 = vadd.f32 %v409, %v461
        %v478 = vadd.f32 %v410, %v462
        %v479 = vadd.f32 %v411, %v463
        %v480 = vadd.f32 %v412, %v464
        %v481 = vadd.f32 %v413, %v465
        %v482 = vadd.f32 %v414, %v466
        %v483 = vadd.f32 %v415, %v467
        %v484 = vadd.f32 %v416, %v468
        %v485 = vadd.f32 %v417, %v469
        %v486 = vadd.f32 %v418, %v470
        %v487 = vld [vmem:[%s2] sm:$0x1]
        %488 = vmatprep.subr.mxu0 0.0
        %489 = vmatpush1.msra.mxu0 %v471
        %490 = vmatprep.subr.mxu0 0.0
        %491 = vmatpush1.msra.mxu0 %v472
        %492 = vmatprep.subr.mxu0 0.0
        %493 = vmatpush1.msra.mxu0 %v473
        %494 = vmatprep.subr.mxu0 0.0
        %495 = vmatpush1.msra.mxu0 %v474
        %496 = vmatprep.subr.mxu0 0.0
        %497 = vmatpush1.msra.mxu0 %v475
        %498 = vmatprep.subr.mxu0 0.0
        %499 = vmatpush1.msra.mxu0 %v476
        %500 = vmatprep.subr.mxu0 0.0
        %501 = vmatpush1.msra.mxu0 %v477
        %502 = vmatprep.subr.mxu0 0.0
        %503 = vmatpush1.msra.mxu0 %v478
        %504 = vmatprep.subr.mxu0 0.0
        %505 = vmatpush1.msra.mxu0 %v479
        %506 = vmatprep.subr.mxu0 0.0
        %507 = vmatpush1.msra.mxu0 %v480
        %508 = vmatprep.subr.mxu0 0.0
        %509 = vmatpush1.msra.mxu0 %v481
        %510 = vmatprep.subr.mxu0 0.0
        %511 = vmatpush1.msra.mxu0 %v482
        %512 = vmatprep.subr.mxu0 0.0
        %513 = vmatpush1.msra.mxu0 %v483
        %514 = vmatprep.subr.mxu0 0.0
        %515 = vmatpush1.msra.mxu0 %v484
        %516 = vmatprep.subr.mxu0 0.0
        %517 = vmatpush1.msra.mxu0 %v485
        %518 = vmatprep.subr.mxu0 0.0
        %519 = vmatpush1.msra.mxu0 %v486
        %520 = vmatprep.subr.mxu0 0.0
        %521 = vmatpush1.msra.mxu0 0.0
        %522 = vmatprep.subr.mxu0 0.0
        %523 = vmatpush1.msra.mxu0 0.0
        %524 = vmatprep.subr.mxu0 0.0
        %525 = vmatpush1.msra.mxu0 0.0
        %526 = vmatprep.subr.mxu0 0.0
        %527 = vmatpush1.msra.mxu0 0.0
        %528 = vmatprep.subr.mxu0 0.0
        %529 = vmatpush1.msra.mxu0 0.0
        %530 = vmatprep.subr.mxu0 0.0
        %531 = vmatpush1.msra.mxu0 0.0
        %532 = vmatprep.subr.mxu0 0.0
        %533 = vmatpush1.msra.mxu0 0.0
        %534 = vmatprep.subr.mxu0 0.0
        %535 = vmatpush1.msra.mxu0 0.0
        %536 = vmatprep.subr.mxu0 0.0
        %537 = vmatpush1.msra.mxu0 0.0
        %538 = vmatprep.subr.mxu0 0.0
        %539 = vmatpush1.msra.mxu0 0.0
        %540 = vmatprep.subr.mxu0 0.0
        %541 = vmatpush1.msra.mxu0 0.0
        %542 = vmatprep.subr.mxu0 0.0
        %543 = vmatpush1.msra.mxu0 0.0
        %544 = vmatprep.subr.mxu0 0.0
        %545 = vmatpush1.msra.mxu0 0.0
        %546 = vmatprep.subr.mxu0 0.0
        %547 = vmatpush1.msra.mxu0 0.0
        %548 = vmatprep.subr.mxu0 0.0
        %549 = vmatpush1.msra.mxu0 0.0
        %550 = vmatprep.subr.mxu0 0.0
        %551 = vmatpush1.msra.mxu0 0.0
        %552 = vmatprep.mubr.f32.mxu0 0.0
        %553 = vmatmul.mubr.f32.gmra.mrb[0].mxu0 %v487
        %v554 = vpop.f32.mrb[0].mxu0
        %v555 = vadd.f32 0.0, %v554
        %v556 = vpop.f32.mrb[0].mxu0
        %557 = vdwg.mxu0
        %v558 = vadd.f32 %v264, %v555
        %559 = vst [vmem:[%s248] sm:$0x1] %v558
        %s560 = sand.u32 %s126, 1
        %s561 = scalar_lea.sflag [#allocation4], %s560
        %s562 = sand.u32 %s126, 1
        %s563 = scalar_lea.vmem [#allocation7], %s562
        // Predicated region
        $region45: #{tpu_custom_call.1} parent=35 // pred_check
          %p564 = pneg %p136
        $region46: #{tpu_custom_call.1} parent=35 // pred_check_branch
          %566 = sbr.rel (%p564) target = $region48
        $region47: #{tpu_custom_call.1} parent=35 // pred_region
          %s568 = ssub.s32 16, 16
          %569 = vsyncadd %s561, %s568
          %s570 = smul.addr %s24, 16
          %s571 = scalar_lea.hbm %s4, %s570
          %s573 = sshll.u32 %s563, 4
          %s574 = int_to_ptr.vmem [resolvable:$true] %s573
          %576 = dma.vmem_to_hbm [thread:$0]  %s574, 16, %s571, %s561
        $region48: #{tpu_custom_call.1} parent=35 // pred_fallthru
          _
      $region36: #{tpu_custom_call.1} parent=5 // pred_fallthru
        _
      %p577 = scmp.le.s32.totalorder 2, %s19
      // Predicated region
      $region49: #{tpu_custom_call.1} parent=5 // pred_check
        %p578 = pneg %p577
      $region50: #{tpu_custom_call.1} parent=5 // pred_check_branch
        %580 = sbr.rel (%p578) target = $region52
      $region51: #{tpu_custom_call.1} parent=5 // pred_region
        %s581 = ssub.s32 %s19, 2
        // Predicated region
        $region53: #{tpu_custom_call.1} parent=51 // pred_check
          %p582 = pneg %p142
        $region54: #{tpu_custom_call.1} parent=51 // pred_check_branch
          %584 = sbr.rel (%p582) target = $region56
        $region55: #{tpu_custom_call.1} parent=51 // pred_region
          %s585 = sand.u32 %s127, 1
          %s586 = scalar_lea.sflag [#allocation4], %s585
          %s587 = sand.u32 %s127, 1
          %s588 = scalar_lea.vmem [#allocation7], %s587
          %589 = dma.done %s586, 16
        $region56: #{tpu_custom_call.1} parent=51 // pred_fallthru
          _
      $region52: #{tpu_custom_call.1} parent=5 // pred_fallthru
        _
    $region6: #{tpu_custom_call.1} parent=1 // loop_footer
      %s23 = sadd.s32 1, %s19
    $region7: #{tpu_custom_call.1} parent=1 // loop_footer_branch
      %18 = sbr.rel target = $region3
    $region8: #{tpu_custom_call.1} parent=1 // loop_exit
      _
    %590 = vsyncpa [#allocation3], 1
    %s591 = scalar_lea.sflag [#allocation3], 1
    %592 = vsyncpa %s591, 1
    %593 = vsyncpa [#allocation6], 1
    %s594 = scalar_lea.sflag [#allocation6], 1
    %595 = vsyncpa %s594, 1
    %596 = vsyncpa [#allocation4], 1
    %s597 = scalar_lea.sflag [#allocation4], 1
    %598 = vsyncpa %s597, 1

</llo_original>
